<compile_context>
chip_gen: v6e
topology: v6e:2x2x1
jax: 0.10.0
libtpu: 0.0.40
codegen_flags: <defaults>
</compile_context>

<pallas_src>
import functools

import jax
import jax.numpy as jnp
from jax.experimental import pallas as pl
from jax.experimental.pallas import tpu as pltpu


# ----------------------------- tiling helpers -------------------------------

def _pick_tile(dim, cap, align):
    """Largest tile <= cap that divides `dim` and is a multiple of `align`;
    falls back to the full dimension (always legal: block == full array dim)."""
    if dim <= cap:
        return dim
    t = (cap // align) * align
    while t >= align:
        if dim % t == 0:
            return t
        t -= align
    return dim


def _pick_heads_per_block(num_heads, head_dim, seq):
    """Largest head group that divides num_heads, keeps the f32 score matrices
    under ~8 MiB per grid step, and keeps the QKV/O blocks lane-dense."""
    score_bytes = seq * seq * 4
    fallback = num_heads
    for hb in range(num_heads, 0, -1):
        if num_heads % hb:
            continue
        lane_ok = (hb == num_heads) or ((hb * head_dim) % 128 == 0)
        if not lane_ok:
            continue
        if hb * score_bytes <= 8 * 1024 * 1024:
            return hb
        fallback = hb
    return fallback


# ----------------------------- Pallas kernels ------------------------------

def _fused_linear_kernel(*refs, has_ln, has_res, act, eps):
    """Tiled matmul with optional LayerNorm prologue and
    (LayerScale*out + residual) / GELU epilogue.  K is the last grid axis."""
    acc_ref = refs[-1]
    o_ref = refs[-2]
    x_ref, w_ref, b_ref = refs[0], refs[1], refs[2]
    idx = 3
    if has_ln:
        g_ref, be_ref = refs[idx], refs[idx + 1]
        idx += 2
    if has_res:
        res_ref, ls_ref = refs[idx], refs[idx + 1]
        idx += 2

    k = pl.program_id(2)

    @pl.when(k == 0)
    def _():
        acc_ref[...] = jnp.zeros_like(acc_ref)

    x = x_ref[...]
    if has_ln:
        # LayerNorm over the (full-K) feature axis, statistics in f32.
        xf = x.astype(jnp.float32)
        mu = jnp.mean(xf, axis=-1, keepdims=True)
        var = jnp.mean(jnp.square(xf - mu), axis=-1, keepdims=True)
        xf = (xf - mu) * jax.lax.rsqrt(var + eps)
        xf = xf * g_ref[...].astype(jnp.float32) + be_ref[...].astype(jnp.float32)
        x = xf.astype(x_ref.dtype)

    acc_ref[...] += jnp.dot(x, w_ref[...], preferred_element_type=jnp.float32)

    @pl.when(k == pl.num_programs(2) - 1)
    def _():
        y = acc_ref[...] + b_ref[...].astype(jnp.float32)
        if act == "gelu":
            y = jax.nn.gelu(y, approximate=False)   # timm nn.GELU() is exact (erf)
        if has_res:
            y = res_ref[...].astype(jnp.float32) + y * ls_ref[...].astype(jnp.float32)
        o_ref[...] = y.astype(o_ref.dtype)


def fused_linear(x, w, b, *, ln=None, residual=None, ls=None, act=None,
                 eps=1e-6, out_dtype=None,
                 tm_cap=256, tn_cap=512, tk_cap=512):
    """y = [LN](x) @ w + b  [-> gelu]  [-> residual + ls * y]

    x: (M, K), w: (K, N), b: (N,), ln: (gamma, beta) over K,
    residual: (M, N), ls: (N,).
    """
    M, K = x.shape
    N = w.shape[1]
    out_dtype = out_dtype or x.dtype
    has_ln = ln is not None
    has_res = residual is not None

    tm = _pick_tile(M, tm_cap, 8)
    tn = _pick_tile(N, tn_cap, 128)
    tk = K if has_ln else _pick_tile(K, tk_cap, 128)   # LN needs the full row
    grid = (M // tm, N // tn, K // tk)

    inputs = [x, w, b.reshape(1, N)]
    in_specs = [
        pl.BlockSpec((tm, tk), lambda i, j, k: (i, k)),
        pl.BlockSpec((tk, tn), lambda i, j, k: (k, j)),
        pl.BlockSpec((1, tn), lambda i, j, k: (0, j)),
    ]
    if has_ln:
        g, be = ln
        inputs += [g.reshape(1, K), be.reshape(1, K)]
        in_specs += [pl.BlockSpec((1, tk), lambda i, j, k: (0, k)),
                     pl.BlockSpec((1, tk), lambda i, j, k: (0, k))]
    if has_res:
        inputs += [residual, ls.reshape(1, N)]
        in_specs += [pl.BlockSpec((tm, tn), lambda i, j, k: (i, j)),
                     pl.BlockSpec((1, tn), lambda i, j, k: (0, j))]

    return pl.pallas_call(
        functools.partial(_fused_linear_kernel, has_ln=has_ln, has_res=has_res,
                          act=act, eps=eps),
        grid=grid,
        out_shape=jax.ShapeDtypeStruct((M, N), out_dtype),
        in_specs=in_specs,
        out_specs=pl.BlockSpec((tm, tn), lambda i, j, k: (i, j)),
        scratch_shapes=[pltpu.VMEM((tm, tn), jnp.float32)],
        compiler_params=pltpu.CompilerParams(
            dimension_semantics=("parallel", "parallel", "arbitrary")),
    )(*inputs)


def _fused_mlp_kernel(x_ref, g_ref, be_ref, w1_ref, b1_ref, w2_ref, b2_ref,
                      ls_ref, o_ref, acc_ref, xn_ref, *, eps):
    """out = x + ls * (fc2(gelu(fc1(LN(x)))) ) with the hidden dim streamed
    as the last ('arbitrary') grid axis; the (M, 4D) hidden never hits HBM."""
    h = pl.program_id(1)

    @pl.when(h == 0)
    def _():
        xf = x_ref[...].astype(jnp.float32)
        mu = jnp.mean(xf, axis=-1, keepdims=True)
        var = jnp.mean(jnp.square(xf - mu), axis=-1, keepdims=True)
        xf = (xf - mu) * jax.lax.rsqrt(var + eps)
        xf = xf * g_ref[...].astype(jnp.float32) + be_ref[...].astype(jnp.float32)
        xn_ref[...] = xf.astype(xn_ref.dtype)
        acc_ref[...] = jnp.zeros_like(acc_ref)

    hid = jnp.dot(xn_ref[...], w1_ref[...], preferred_element_type=jnp.float32)
    hid = hid + b1_ref[...].astype(jnp.float32)
    hid = jax.nn.gelu(hid, approximate=False)          # exact erf GELU, f32
    acc_ref[...] += jnp.dot(hid.astype(xn_ref.dtype), w2_ref[...],
                            preferred_element_type=jnp.float32)

    @pl.when(h == pl.num_programs(1) - 1)
    def _():
        y = acc_ref[...] + b2_ref[...].astype(jnp.float32)
        y = x_ref[...].astype(jnp.float32) + y * ls_ref[...].astype(jnp.float32)
        o_ref[...] = y.astype(o_ref.dtype)


def fused_mlp(x, ln_g, ln_b, w1, b1, w2, b2, ls, *, eps=1e-6,
              tm_cap=256, th_cap=512):
    M, D = x.shape
    H = w1.shape[1]
    tm = _pick_tile(M, tm_cap, 8)
    th = _pick_tile(H, th_cap, 128)
    grid = (M // tm, H // th)
    return pl.pallas_call(
        functools.partial(_fused_mlp_kernel, eps=eps),
        grid=grid,
        out_shape=jax.ShapeDtypeStruct((M, D), x.dtype),
        in_specs=[
            pl.BlockSpec((tm, D), lambda i, h: (i, 0)),     # x (LN input + residual)
            pl.BlockSpec((1, D), lambda i, h: (0, 0)),      # ln gamma
            pl.BlockSpec((1, D), lambda i, h: (0, 0)),      # ln beta
            pl.BlockSpec((D, th), lambda i, h: (0, h)),     # fc1 w chunk
            pl.BlockSpec((1, th), lambda i, h: (0, h)),     # fc1 b chunk
            pl.BlockSpec((th, D), lambda i, h: (h, 0)),     # fc2 w chunk
            pl.BlockSpec((1, D), lambda i, h: (0, 0)),      # fc2 b
            pl.BlockSpec((1, D), lambda i, h: (0, 0)),      # layerscale
        ],
        out_specs=pl.BlockSpec((tm, D), lambda i, h: (i, 0)),
        scratch_shapes=[pltpu.VMEM((tm, D), jnp.float32),   # f32 accumulator
                        pltpu.VMEM((tm, D), x.dtype)],      # normalized x
        compiler_params=pltpu.CompilerParams(
            dimension_semantics=("parallel", "arbitrary")),
    )(x, ln_g.reshape(1, D), ln_b.reshape(1, D), w1, b1.reshape(1, H),
      w2, b2.reshape(1, D), ls.reshape(1, D))


def _attn_kernel(qkv_ref, o_ref, *, heads, head_dim, scale):
    """Per (batch, head-group) attention.  qkv_ref: (1, T, 3, Hb*Dh), taken
    straight from the QKV linear's output layout (no XLA transposes).
    Scores/softmax in f32; MXU matmuls take bf16 operands.  Output is the
    lane-dense (T, Hb*Dh) slab already in the layout the proj linear wants."""
    qkv = qkv_ref[...][0]                                  # (T, 3, Hb*Dh)
    outs = []
    for h in range(heads):
        sl = slice(h * head_dim, (h + 1) * head_dim)
        q = qkv[:, 0, sl]                                  # (T, Dh)
        k = qkv[:, 1, sl]
        v = qkv[:, 2, sl]
        s = jax.lax.dot_general(q, k, (((1,), (1,)), ((), ())),
                                preferred_element_type=jnp.float32)
        s = s * scale
        s = s - jnp.max(s, axis=-1, keepdims=True)
        p = jnp.exp(s)
        l = jnp.sum(p, axis=-1, keepdims=True)
        o = jnp.dot(p.astype(v.dtype), v, preferred_element_type=jnp.float32)
        o = o * pl.reciprocal(l, approx=True)
        outs.append(o)
    out = outs[0] if heads == 1 else jnp.concatenate(outs, axis=-1)
    o_ref[0] = out.astype(o_ref.dtype)


def attention_from_qkv(qkv, B, T, num_heads, head_dim):
    """qkv: (B*T, 3*D) in timm layout [q|k|v], heads contiguous inside each.
    Returns (B*T, D) attention output."""
    D = num_heads * head_dim
    scale = 1.0 / float(head_dim) ** 0.5
    hb = _pick_heads_per_block(num_heads, head_dim, T)
    qkv4 = qkv.reshape(B, T, 3, D)                          # pure reshape, no copy
    out = pl.pallas_call(
        functools.partial(_attn_kernel, heads=hb, head_dim=head_dim, scale=scale),
        grid=(B, num_heads // hb),
        out_shape=jax.ShapeDtypeStruct((B, T, D), qkv.dtype),
        in_specs=[pl.BlockSpec((1, T, 3, hb * head_dim),
                               lambda b, h: (b, 0, 0, h))],
        out_specs=pl.BlockSpec((1, T, hb * head_dim), lambda b, h: (b, 0, h)),
        compiler_params=pltpu.CompilerParams(
            dimension_semantics=("parallel", "parallel")),
    )(qkv4)
    return out.reshape(B * T, D)


# ------------------------------- JAX glue -----------------------------------

def patchify(img, P):
    """NCHW image -> (B, N, C*P*P) patches (flattened in (C, Ph, Pw) order,
    matching PyTorch Conv2d weight.reshape(D, C*P*P))."""
    B, C, H, W = img.shape
    nh, nw = H // P, W // P
    x = img.reshape(B, C, nh, P, nw, P)
    x = x.transpose(0, 2, 4, 1, 3, 5)         # (B, nh, nw, C, P, P)
    return x.reshape(B, nh * nw, C * P * P)


def vit_block(x2, p, B, T, num_heads, head_dim, eps):
    """timm ViT block, 4 Pallas calls:
       qkv (LN fused) -> attention -> proj (LS+residual fused) -> fused MLP."""
    qkv = fused_linear(x2, p["qkv_w"], p["qkv_b"],
                       ln=(p["ln1_g"], p["ln1_b"]), eps=eps)       # (B*T, 3D)
    o = attention_from_qkv(qkv, B, T, num_heads, head_dim)          # (B*T, D)
    x2 = fused_linear(o, p["proj_w"], p["proj_b"],
                      residual=x2, ls=p["ls1"])                     # (B*T, D)
    x2 = fused_mlp(x2, p["ln2_g"], p["ln2_b"],
                   p["fc1_w"], p["fc1_b"], p["fc2_w"], p["fc2_b"],
                   p["ls2"], eps=eps)                               # (B*T, D)
    return x2


def featurizer_forward(img, params, *, patch, num_heads, use_cls, depth, eps=1e-6):
    """ViT forward emulating timm get_intermediate_layers(n={depth-2}):
    run blocks 0..depth-2, no final norm, return patch tokens only."""
    B = img.shape[0]
    pt = patchify(img, patch).astype(jnp.bfloat16)                  # (B, N, C*P*P)
    N, Kp = pt.shape[1], pt.shape[2]
    D = params["patch_w"].shape[1]
    x = fused_linear(pt.reshape(B * N, Kp), params["patch_w"], params["patch_b"])
    x = x.reshape(B, N, D)
    if use_cls:
        cls = jnp.broadcast_to(params["cls"], (B, 1, D))
        x = jnp.concatenate([cls, x], axis=1)
    x = x + params["pos"][None, :, :]
    T = x.shape[1]
    head_dim = D // num_heads
    x2 = x.reshape(B * T, D).astype(jnp.bfloat16)
    for blk in params["blocks"][: depth - 1]:                       # intermediate layer depth-2
        x2 = vit_block(x2, blk, B, T, num_heads, head_dim, eps)
    x = x2.reshape(B, T, D)
    if use_cls:
        x = x[:, 1:, :]                                             # drop prefix (cls) token
    return x


def fused_vision_tower_forward(pixel_values, p_dino, p_siglip, *, patch, num_heads, depth):
    # torch.split(pixel_values, [3, 3], dim=1)
    img = pixel_values[:, :3]
    img_fused = pixel_values[:, 3:]
    patches = featurizer_forward(
        img, p_dino, patch=patch, num_heads=num_heads, use_cls=True, depth=depth)
    patches_fused = featurizer_forward(
        img_fused, p_siglip, patch=patch, num_heads=num_heads, use_cls=False, depth=depth)
    # torch.cat([patches, patches_fused], dim=2)
    return jnp.concatenate([patches, patches_fused], axis=2).astype(jnp.float32)


# --------------------------- deterministic params ---------------------------

def init_vit_params(key, *, in_dim, embed_dim, depth, mlp_ratio, num_tokens,
                    use_cls, use_layerscale):
    D = embed_dim
    hidden = int(D * mlp_ratio)
    keys = jax.random.split(key, 4 + depth)
    params = {
        "patch_w": 0.02 * jax.random.normal(keys[0], (in_dim, D), jnp.float32),
        "patch_b": jnp.zeros((D,), jnp.float32),
        "pos": 0.02 * jax.random.normal(keys[1], (num_tokens, D), jnp.float32),
    }
    if use_cls:
        params["cls"] = 0.02 * jax.random.normal(keys[2], (1, 1, D), jnp.float32)
    blocks = []
    for i in range(depth):
        bk = jax.random.split(keys[4 + i], 4)
        ls_init = 1e-5 if use_layerscale else 1.0   # no-LayerScale == identity scale
        blocks.append({
            "ln1_g": jnp.ones((D,), jnp.float32), "ln1_b": jnp.zeros((D,), jnp.float32),
            "qkv_w": 0.02 * jax.random.normal(bk[0], (D, 3 * D), jnp.float32),
            "qkv_b": jnp.zeros((3 * D,), jnp.float32),
            "proj_w": 0.02 * jax.random.normal(bk[1], (D, D), jnp.float32),
            "proj_b": jnp.zeros((D,), jnp.float32),
            "ls1": jnp.full((D,), ls_init, jnp.float32),
            "ln2_g": jnp.ones((D,), jnp.float32), "ln2_b": jnp.zeros((D,), jnp.float32),
            "fc1_w": 0.02 * jax.random.normal(bk[2], (D, hidden), jnp.float32),
            "fc1_b": jnp.zeros((hidden,), jnp.float32),
            "fc2_w": 0.02 * jax.random.normal(bk[3], (hidden, D), jnp.float32),
            "fc2_b": jnp.zeros((D,), jnp.float32),
            "ls2": jnp.full((D,), ls_init, jnp.float32),
        })
    params["blocks"] = blocks
    # bf16 weights for the MXU path; all normalization / softmax / GELU math
    # stays in f32 inside the kernels (v5e-safe), accumulation is f32.
    return jax.tree_util.tree_map(lambda a: a.astype(jnp.bfloat16), params)


# ---------------------------------- main -------------------------------------

if __name__ == "__main__":
    # Small shapes consistent with the module: 6-channel NCHW pixel input,
    # two ViTs with the same patch grid so the token counts line up for concat.
    B, Himg, Wimg, P = 2, 16, 16, 8
    D_DINO, D_SIGLIP = 32, 32
    HEADS = 4
    DEPTH = 3                      # get_intermediate_layers(n={DEPTH-2}) -> run DEPTH-1 blocks
    N = (Himg // P) * (Wimg // P)  # 4 patch tokens per image

    key = jax.random.PRNGKey(0)
    k_px, k_p1, k_p2 = jax.random.split(key, 3)

    pixel_values = jax.random.normal(k_px, (B, 6, Himg, Wimg), jnp.float32)

    # Featurizer 1: DINOv2-like (cls token + LayerScale).
    p_dino = init_vit_params(
        k_p1, in_dim=3 * P * P, embed_dim=D_DINO, depth=DEPTH, mlp_ratio=4.0,
        num_tokens=N + 1, use_cls=True, use_layerscale=True)
    # Featurizer 2: SigLIP-like (no cls token, no LayerScale).
    p_siglip = init_vit_params(
        k_p2, in_dim=3 * P * P, embed_dim=D_SIGLIP, depth=DEPTH, mlp_ratio=4.0,
        num_tokens=N, use_cls=False, use_layerscale=False)

    out = fused_vision_tower_forward(
        pixel_values, p_dino, p_siglip, patch=P, num_heads=HEADS, depth=DEPTH)
    out = jax.block_until_ready(out)

    assert out.shape == (B, N, D_DINO + D_SIGLIP), out.shape
    assert out.dtype == jnp.float32
    assert bool(jnp.all(jnp.isfinite(out)))
    print("KERNEL_OK")
</pallas_src>

<mosaic_0001>
module attributes {stable_mosaic.version = 11 : i64} {
  func.func @_fused_linear_kernel(%arg0: i32, %arg1: i32, %arg2: i32, %arg3: memref<8x192xbf16, #tpu.memory_space<vmem>>, %arg4: memref<192x32xbf16, #tpu.memory_space<vmem>>, %arg5: memref<1x32xbf16, #tpu.memory_space<vmem>>, %arg6: memref<8x32xbf16, #tpu.memory_space<vmem>>, %arg7: memref<8x32xf32, #tpu.memory_space<vmem>>) attributes {dimension_semantics = [#tpu.dimension_semantics<parallel>, #tpu.dimension_semantics<parallel>, #tpu.dimension_semantics<arbitrary>], iteration_bounds = array<i64: 1, 1, 1>, scalar_prefetch = 0 : i64, scratch_operands = 1 : i64, tpu.core_type = #tpu.core_type<tc>, window_params = [{transform_indices = @transform_0, window_bounds = array<i64: 8, 192>}, {transform_indices = @transform_1, window_bounds = array<i64: 192, 32>}, {transform_indices = @transform_2, window_bounds = array<i64: 1, 32>}, {transform_indices = @transform_3, window_bounds = array<i64: 8, 32>}]} {
    %c0_i32 = arith.constant 0 : i32
    %0 = arith.cmpi eq, %arg2, %c0_i32 : i32
    %1 = arith.extui %0 : i1 to i32
    %c0_i32_0 = arith.constant 0 : i32
    %2 = arith.cmpi ne, %1, %c0_i32_0 : i32
    scf.if %2 {
      %cst_10 = arith.constant 0.000000e+00 : f32
      %12 = vector.broadcast %cst_10 : f32 to vector<8x32xf32>
      %c0_11 = arith.constant 0 : index
      %c0_12 = arith.constant 0 : index
      %13 = vector.load %arg7[%c0_11, %c0_12] : memref<8x32xf32, #tpu.memory_space<vmem>>, vector<8x32xf32>
      tpu.vector_store %arg7[%c0_11, %c0_12], %12 {strides = array<i32>} : memref<8x32xf32, #tpu.memory_space<vmem>>, vector<8x32xf32>,
    } else {
    }
    %c0 = arith.constant 0 : index
    %c0_1 = arith.constant 0 : index
    %3 = vector.load %arg3[%c0, %c0_1] : memref<8x192xbf16, #tpu.memory_space<vmem>>, vector<8x192xbf16>
    %c0_2 = arith.constant 0 : index
    %c0_3 = arith.constant 0 : index
    %4 = vector.load %arg7[%c0_2, %c0_3] : memref<8x32xf32, #tpu.memory_space<vmem>>, vector<8x32xf32>
    %c0_4 = arith.constant 0 : index
    %c0_5 = arith.constant 0 : index
    %5 = vector.load %arg4[%c0_4, %c0_5] : memref<192x32xbf16, #tpu.memory_space<vmem>>, vector<192x32xbf16>
    %cst = arith.constant dense<0.000000e+00> : vector<8x32xf32>
    %6 = tpu.matmul %3, %5, %cst {dimension_numbers = #tpu.dot_dimension_numbers<[1], [0], [0], [1], [0, 0, 1, 1], [], []>} : vector<8x192xbf16>, vector<192x32xbf16>, vector<8x32xf32> -> vector<8x32xf32>
    %7 = arith.addf %4, %6 : vector<8x32xf32>
    %c0_6 = arith.constant 0 : index
    %c0_7 = arith.constant 0 : index
    %8 = vector.load %arg7[%c0_6, %c0_7] : memref<8x32xf32, #tpu.memory_space<vmem>>, vector<8x32xf32>
    tpu.vector_store %arg7[%c0_6, %c0_7], %7 {strides = array<i32>} : memref<8x32xf32, #tpu.memory_space<vmem>>, vector<8x32xf32>,
    %c0_i32_8 = arith.constant 0 : i32
    %9 = arith.cmpi eq, %arg2, %c0_i32_8 : i32
    %10 = arith.extui %9 : i1 to i32
    %c0_i32_9 = arith.constant 0 : i32
    %11 = arith.cmpi ne, %10, %c0_i32_9 : i32
    scf.if %11 {
      %c0_10 = arith.constant 0 : index
      %c0_11 = arith.constant 0 : index
      %12 = vector.load %arg7[%c0_10, %c0_11] : memref<8x32xf32, #tpu.memory_space<vmem>>, vector<8x32xf32>
      %c0_12 = arith.constant 0 : index
      %c0_13 = arith.constant 0 : index
      %13 = vector.load %arg5[%c0_12, %c0_13] : memref<1x32xbf16, #tpu.memory_space<vmem>>, vector<1x32xbf16>
      %14 = arith.extf %13 : vector<1x32xbf16> to vector<1x32xf32>
      %15 = vector.broadcast %14 : vector<1x32xf32> to vector<8x32xf32>
      %16 = arith.addf %12, %15 : vector<8x32xf32>
      %17 = arith.truncf %16 : vector<8x32xf32> to vector<8x32xbf16>
      %c0_14 = arith.constant 0 : index
      %c0_15 = arith.constant 0 : index
      %18 = vector.load %arg6[%c0_14, %c0_15] : memref<8x32xbf16, #tpu.memory_space<vmem>>, vector<8x32xbf16>
      tpu.vector_store %arg6[%c0_14, %c0_15], %17 {strides = array<i32>} : memref<8x32xbf16, #tpu.memory_space<vmem>>, vector<8x32xbf16>,
    } else {
    }
    return
  }
  func.func @transform_0(%arg0: i32, %arg1: i32, %arg2: i32) -> (i32, i32) {
    %c0_i32 = arith.constant 0 : i32
    return %arg0, %arg2 : i32, i32
  }
  func.func @transform_1(%arg0: i32, %arg1: i32, %arg2: i32) -> (i32, i32) {
    %c0_i32 = arith.constant 0 : i32
    return %arg2, %arg1 : i32, i32
  }
  func.func @transform_2(%arg0: i32, %arg1: i32, %arg2: i32) -> (i32, i32) {
    %c0_i32 = arith.constant 0 : i32
    %c0_i32_0 = arith.constant 0 : i32
    return %c0_i32, %arg1 : i32, i32
  }
  func.func @transform_3(%arg0: i32, %arg1: i32, %arg2: i32) -> (i32, i32) {
    %c0_i32 = arith.constant 0 : i32
    return %arg0, %arg1 : i32, i32
  }
}

</mosaic_0001>

<llo_original>
// kernel: tpu_custom_call.1
$region0: #{tpu_custom_call.1}
  #allocation0 [shape = 'u32[]', space=smem, size = 0x4, offset = 0x4, fixed_abs, tag = 'smem constant byte address 0x4 - core index']
  #allocation1 [shape = 'u32[144,128]{1,0:T(1,128)}', space=vmem, size = 0x12000, scoped, tag = 'internal scratch']
  #allocation2 [shape = 'f32[8,32]{1,0:T(8,128)}', space=vmem, size = 0x1000, scoped, tag = 'scratch operand']
  %s0 = inlined_call_operand.vmem [shape: bf16[8,192], index: 0, kind: input, shape index: {}]
  %s1 = inlined_call_operand.vmem [shape: bf16[192,32], index: 1, kind: input, shape index: {}]
  %s2 = inlined_call_operand.vmem [shape: bf16[1,32], index: 2, kind: input, shape index: {}]
  %s3 = inlined_call_operand.hbm [shape: bf16[8,32], index: 3, kind: output, shape index: {}]
  %s4 = sld [smem:[#allocation0]]
  $region30: #{tpu_custom_call.1} parent=0
    _
  %s6 = ssub.s32 1, %s4
  %s7 = scalar_select 0, %s6, %s4
  $region1: #{tpu_custom_call.1} parent=0
    #allocation3 [shape = 'u8[2048]{0}', space=vmem, size = 0x800, scoped, tag = 'output window, operand 0, single buffered']
    #allocation4 [shape = 's32[1]{0}', space=sflag, size = 0x4, scoped, tag = 'scoped memory for tpu_custom_call.1']
    %8 = vsyncpa [#allocation4], 0
    // Predicated region
    $region2: #{tpu_custom_call.1} parent=1 // pred_check
      _
    $region3: #{tpu_custom_call.1} parent=1 // pred_check_branch
      %10 = sbr.rel (0) target = $region5
    $region4: #{tpu_custom_call.1} parent=1 // pred_region
      _
    $region5: #{tpu_custom_call.1} parent=1 // pred_fallthru
      _
    // Predicated region
    $region6: #{tpu_custom_call.1} parent=1 // pred_check
      _
    $region7: #{tpu_custom_call.1} parent=1 // pred_check_branch
      %12 = sbr.rel (0) target = $region9
    $region8: #{tpu_custom_call.1} parent=1 // pred_region
      _
    $region9: #{tpu_custom_call.1} parent=1 // pred_fallthru
      _
    // Predicated region
    $region10: #{tpu_custom_call.1} parent=1 // pred_check
      _
    $region11: #{tpu_custom_call.1} parent=1 // pred_check_branch
      %14 = sbr.rel (0) target = $region13
    $region12: #{tpu_custom_call.1} parent=1 // pred_region
      _
    $region13: #{tpu_custom_call.1} parent=1 // pred_fallthru
      _
    %p16 = scmp.eq.s32.totalorder 0, 0
    // Predicated region
    $region14: #{tpu_custom_call.1} parent=1 // pred_check
      %p17 = pneg %p16
    $region15: #{tpu_custom_call.1} parent=1 // pred_check_branch
      %19 = sbr.rel (%p17) target = $region17
    $region16: #{tpu_custom_call.1} parent=1 // pred_region
      %vm20 = vcmask 261120
      %21 = vst.msk [vmem:[#allocation2] sm:$0xff] %vm20, 0.0
    $region17: #{tpu_custom_call.1} parent=1 // pred_fallthru
      _
    %v22 = vld [vmem:[%s0] sm:$0xff]
    %v23 = vld [vmem:[#allocation2] sm:$0xff]
    %v24 = vld [vmem:[%s1] sm:$0xf]
    %v25 = vld [vmem:[%s1 + $0x4] sm:$0xf]
    %v26 = vld [vmem:[%s1 + $0x8] sm:$0xf]
    %v27 = vld [vmem:[%s1 + $0xc] sm:$0xf]
    %v28 = vld [vmem:[%s1 + $0x10] sm:$0xf]
    %v29 = vld [vmem:[%s1 + $0x14] sm:$0xf]
    %v30 = vld [vmem:[%s1 + $0x18] sm:$0xf]
    %v31 = vld [vmem:[%s1 + $0x1c] sm:$0xf]
    %v32 = vld [vmem:[%s1 + $0x20] sm:$0xf]
    %v33 = vld [vmem:[%s1 + $0x24] sm:$0xf]
    %v34 = vld [vmem:[%s1 + $0x28] sm:$0xf]
    %v35 = vld [vmem:[%s1 + $0x2c] sm:$0xf]
    %v36 = vld [vmem:[%s1 + $0x30] sm:$0xf]
    %v37 = vld [vmem:[%s1 + $0x34] sm:$0xf]
    %v38 = vld [vmem:[%s1 + $0x38] sm:$0xf]
    %v39 = vld [vmem:[%s1 + $0x3c] sm:$0xf]
    %v40 = vld [vmem:[%s1 + $0x40] sm:$0xf]
    %v41 = vld [vmem:[%s1 + $0x44] sm:$0xf]
    %v42 = vld [vmem:[%s1 + $0x48] sm:$0xf]
    %v43 = vld [vmem:[%s1 + $0x4c] sm:$0xf]
    %v44 = vld [vmem:[%s1 + $0x50] sm:$0xf]
    %v45 = vld [vmem:[%s1 + $0x54] sm:$0xf]
    %v46 = vld [vmem:[%s1 + $0x58] sm:$0xf]
    %v47 = vld [vmem:[%s1 + $0x5c] sm:$0xf]
    %v49 = vunpack.c.l.b16 %v22
    %v50 = vunpack.c.h.b16 %v22
    %v51 = vpack.c.b16 %v49, %v49
    %v52 = vpack.c.b16 %v50, %v50
    %v78 = vunpack.c.l.b16 %v24
    %v79 = vunpack.c.l.b16 %v25
    %v80 = vunpack.c.l.b16 %v26
    %v81 = vunpack.c.l.b16 %v27
    %v82 = vunpack.c.l.b16 %v28
    %v83 = vunpack.c.l.b16 %v29
    %v84 = vunpack.c.l.b16 %v30
    %v85 = vunpack.c.l.b16 %v31
    %v86 = vunpack.c.l.b16 %v32
    %v87 = vunpack.c.l.b16 %v33
    %v88 = vunpack.c.l.b16 %v34
    %v89 = vunpack.c.l.b16 %v35
    %v90 = vunpack.c.l.b16 %v36
    %v91 = vunpack.c.l.b16 %v37
    %v92 = vunpack.c.l.b16 %v38
    %v93 = vunpack.c.l.b16 %v39
    %v94 = vunpack.c.l.b16 %v40
    %v95 = vunpack.c.l.b16 %v41
    %v96 = vunpack.c.l.b16 %v42
    %v97 = vunpack.c.l.b16 %v43
    %v98 = vunpack.c.l.b16 %v44
    %v99 = vunpack.c.l.b16 %v45
    %v100 = vunpack.c.l.b16 %v46
    %v101 = vunpack.c.l.b16 %v47
    %v102 = vpack.c.b16 %v79, %v78
    %v103 = vpack.c.b16 %v81, %v80
    %v104 = vpack.c.b16 %v83, %v82
    %v105 = vpack.c.b16 %v85, %v84
    %v106 = vpack.c.b16 %v87, %v86
    %v107 = vpack.c.b16 %v89, %v88
    %v108 = vpack.c.b16 %v91, %v90
    %v109 = vpack.c.b16 %v93, %v92
    %v110 = vpack.c.b16 %v95, %v94
    %v111 = vpack.c.b16 %v97, %v96
    %v112 = vpack.c.b16 %v99, %v98
    %v113 = vpack.c.b16 %v101, %v100
    %vm126 = vcmask 523264
    %v128 = vsel %vm126, %v52, 0
    %130 = vmatprep.subr.bf16.mxu0 0
    %131 = vmatpush1.bf16.msra.mxu0 %v109
    %132 = vmatprep.subr.bf16.mxu0 0
    %133 = vmatpush1.bf16.msra.mxu0 %v108
    %134 = vmatprep.subr.bf16.mxu0 0
    %135 = vmatpush1.bf16.msra.mxu0 %v107
    %136 = vmatprep.subr.bf16.mxu0 0
    %137 = vmatpush1.bf16.msra.mxu0 %v106
    %138 = vmatprep.subr.bf16.mxu0 0
    %139 = vmatpush1.bf16.msra.mxu0 %v105
    %140 = vmatprep.subr.bf16.mxu0 0
    %141 = vmatpush1.bf16.msra.mxu0 %v104
    %142 = vmatprep.subr.bf16.mxu0 0
    %143 = vmatpush1.bf16.msra.mxu0 %v103
    %144 = vmatprep.subr.bf16.mxu0 0
    %145 = vmatpush1.bf16.msra.mxu0 %v102
    %146 = vmatprep.subr.bf16.mxu0 0
    %147 = vmatpush2.bf16.msra.mxu0 0
    %148 = vmatprep.subr.bf16.mxu0 0
    %149 = vmatpush2.bf16.msra.mxu0 0
    %150 = vmatprep.subr.bf16.mxu0 0
    %151 = vmatpush2.bf16.msra.mxu0 0
    %152 = vmatprep.subr.bf16.mxu0 0
    %153 = vmatpush2.bf16.msra.mxu0 0
    %154 = vmatprep.subr.bf16.mxu0 0
    %155 = vmatpush2.bf16.msra.mxu0 %v113
    %156 = vmatprep.subr.bf16.mxu0 0
    %157 = vmatpush2.bf16.msra.mxu0 %v112
    %158 = vmatprep.subr.bf16.mxu0 0
    %159 = vmatpush2.bf16.msra.mxu0 %v111
    %160 = vmatprep.subr.bf16.mxu0 0
    %161 = vmatpush2.bf16.msra.mxu0 %v110
    %162 = vmatprep.mubr.bf16.mxu0 %v128
    %163 = vmatmul.mubr.bf16.gmra.mxu0 %v51
    %v164 = vpop.f32.mrf.mxu0
    %v165 = vadd.f32 0.0, %v164
    %v166 = vpop.f32.mrf.mxu0
    %v167 = vpop.f32.mrf.mxu0
    %v168 = vpop.f32.mrf.mxu0
    %169 = vdwg.mxu0
    %v170 = vadd.f32 %v23, %v165
    %vm171 = vcmask 261120
    %172 = vst.msk [vmem:[#allocation2] sm:$0xff] %vm171, %v170
    // Predicated region
    $region18: #{tpu_custom_call.1} parent=1 // pred_check
      %p173 = pneg %p16
    $region19: #{tpu_custom_call.1} parent=1 // pred_check_branch
      %175 = sbr.rel (%p173) target = $region21
    $region20: #{tpu_custom_call.1} parent=1 // pred_region
      %v176 = vld [vmem:[#allocation2] sm:$0xff]
      %v177 = vld [vmem:[%s2] sm:$0x1]
      %v178 = vunpack.c.l.bf16 %v177
      %v179 = vlaneseq
      %v180 = vshrl.u32 %v179, 7
      %v181 = vsub.s32 0, %v180
      %v182 = vrot.slane %v178, %v181
      %v183 = vadd.f32 %v176, %v182
      %v184 = vpack.c.bf16 %v183, %v183
      %vm185 = vcmask 257024
      %186 = vst.msk [vmem:[#allocation3] sm:$0xf] %vm185, %v184
    $region21: #{tpu_custom_call.1} parent=1 // pred_fallthru
      _
    // Predicated region
    $region22: #{tpu_custom_call.1} parent=1 // pred_check
      _
    $region23: #{tpu_custom_call.1} parent=1 // pred_check_branch
      %188 = sbr.rel (0) target = $region25
    $region24: #{tpu_custom_call.1} parent=1 // pred_region
      %s190 = ssub.s32 64, 64
      %191 = vsyncadd [#allocation4], %s190
      %s193 = sshll.u32 [#allocation3], 4
      %s194 = int_to_ptr.vmem [resolvable:$true] %s193
      %196 = dma.vmem_to_hbm [thread:$0]  %s194, 64, %s3, [#allocation4]
    $region25: #{tpu_custom_call.1} parent=1 // pred_fallthru
      _
    // Predicated region
    $region26: #{tpu_custom_call.1} parent=1 // pred_check
      _
    $region27: #{tpu_custom_call.1} parent=1 // pred_check_branch
      %198 = sbr.rel (0) target = $region29
    $region28: #{tpu_custom_call.1} parent=1 // pred_region
      %199 = dma.done [#allocation4], 64
    $region29: #{tpu_custom_call.1} parent=1 // pred_fallthru
      _
    %200 = vsyncpa [#allocation4], 1

</llo_original>
